<compile_context>
chip_gen: v5e
topology: v5e:2x2
jax: 0.10.0
libtpu: 0.0.40
codegen_flags: <defaults>
</compile_context>

<pallas_src>
import functools

import jax
import jax.numpy as jnp
from jax.experimental import pallas as pl
from jax.experimental.pallas import tpu as pltpu


def _cdiv(a, b):
    return -(-a // b)


def _round_up(a, m):
    return _cdiv(a, m) * m


# ---------------------------------------------------------------------------
# Kernel body
# ---------------------------------------------------------------------------
def _region_pool_kernel(mask_ref, feat_ref, out_ref, acc_ref, *,
                        inv_hw, mask_resident, cast_bf16):
    # feat_ref: (TC, TK)
    # mask_ref: (KS, R_pad, TK) if mask_resident (whole padded mask resident in
    #           VMEM for the batch) else (R_pad, TK) (tiled along HW)
    # out_ref : (R_pad, TC)  -- lane-dense store, written once at k == last
    # acc_ref : (TC, R_pad) f32 scratch, resident across the HW (k) grid axis.
    k = pl.program_id(2)

    @pl.when(k == 0)
    def _():
        acc_ref[...] = jnp.zeros_like(acc_ref)

    feat = feat_ref[...]
    msk = mask_ref[k] if mask_resident else mask_ref[...]

    if cast_bf16:
        # Single-pass bf16 MXU (f32 operands decompose into 3-6 passes and can
        # flip the kernel from HBM-bound to MXU-push-bound on v5e/v6e).
        # Accumulation stays f32 via preferred_element_type.
        feat = feat.astype(jnp.bfloat16)
        msk = msk.astype(jnp.bfloat16)

    # acc[c, r] += sum_k feat[c, k] * mask[r, k]
    # The big feature tile is the non-transposed (M, K) operand; only the tiny
    # mask tile takes the (N, K) path, keeping the XLU off the per-step
    # critical path.
    acc_ref[...] += jax.lax.dot_general(
        feat, msk,
        dimension_numbers=(((1,), (1,)), ((), ())),
        preferred_element_type=jnp.float32,
    )

    @pl.when(k == pl.num_programs(2) - 1)
    def _():
        # Cast before the transpose so the XLU moves already-narrowed data.
        out_ref[...] = (acc_ref[...] * inv_hw).astype(out_ref.dtype).T


# ---------------------------------------------------------------------------
# Mask preparation (glue, not the hot path -- plain JAX, fused by XLA)
# ---------------------------------------------------------------------------
def _bilinear_resize_align_corners(x, h_out, w_out):
    """F.interpolate(x, size=(h_out, w_out), mode='bilinear', align_corners=True)
    for NCHW input."""
    _, _, h_in, w_in = x.shape

    def coords(n_out, n_in):
        if n_out == 1:
            src = jnp.zeros((1,), jnp.float32)
        else:
            src = jnp.arange(n_out, dtype=jnp.float32) * ((n_in - 1) / (n_out - 1))
        lo = jnp.floor(src).astype(jnp.int32)
        hi = jnp.minimum(lo + 1, n_in - 1)
        frac = src - lo.astype(jnp.float32)
        return lo, hi, frac

    y0, y1, fy = coords(h_out, h_in)
    x0, x1, fx = coords(w_out, w_in)

    rows0 = jnp.take(x, y0, axis=2)
    rows1 = jnp.take(x, y1, axis=2)
    v00 = jnp.take(rows0, x0, axis=3)
    v01 = jnp.take(rows0, x1, axis=3)
    v10 = jnp.take(rows1, x0, axis=3)
    v11 = jnp.take(rows1, x1, axis=3)

    fy = fy[None, None, :, None]
    fx = fx[None, None, None, :]
    top = v00 * (1.0 - fx) + v01 * fx
    bot = v10 * (1.0 - fx) + v11 * fx
    return top * (1.0 - fy) + bot * fy


def _prepare_mask(feature_map, mask):
    _, _, h, w = feature_map.shape
    _, _, hm, wm = mask.shape
    if (hm, wm) != (h, w):
        mask = _bilinear_resize_align_corners(mask, h, w)
        mask = (mask >= 0.5).astype(mask.dtype)   # matches the PyTorch module
    return mask


# ---------------------------------------------------------------------------
# Tile selection (generation-aware via queried per-TC VMEM capacity)
# ---------------------------------------------------------------------------
def _vmem_capacity_bytes():
    try:
        info = pltpu.get_tpu_info()
        cap = getattr(info, "vmem_capacity_bytes", None)
        if cap:
            return int(cap)
    except Exception:
        pass
    return 64 * 1024 * 1024   # conservative fallback: v7x per-TC VMEM


def _select_tiles(b, c, r_pad, hw, itemsize, capacity):
    """Pick (tc, tk, ks, hw_pad, mask_resident)."""
    # Pipelined blocks + scratch get ~45% of physical VMEM
    # (~28 MiB on v7x's 64 MiB/TC, ~57 MiB on v5e/v6e's 128 MiB).
    budget = max(8 << 20, int(capacity * 0.45))
    hw_128 = _round_up(hw, 128)

    # --- channel tile: full extent, or a 128-aligned divisor of C -----------
    if c % 128 != 0:
        tc_candidates = [c]                 # full-extent block (always legal)
    else:
        cap = 512 if c >= 512 else 256
        if b == 1 and c >= 256:
            # Guarantee >= 2 parallel grid points so v7x's 2nd TC isn't idle.
            cap = min(cap, c // 2)
        cap = max(128, cap - cap % 128)
        tc_candidates = [d for d in range(cap, 127, -128) if c % d == 0]

    def plan(tc):
        fixed = 2 * r_pad * tc * itemsize + 4 * tc * r_pad   # out dbuf + acc
        mask_full = 2 * r_pad * hw_128 * itemsize            # dbuf'd resident mask
        resident = mask_full <= budget // 3
        if resident:
            fixed += mask_full
            per_col = 2 * tc * itemsize                      # feat dbuf per HW col
        else:
            per_col = 2 * (tc + r_pad) * itemsize            # feat + mask dbuf
        avail = budget - fixed
        cap_k = max(128, (avail // per_col) // 128 * 128) if avail > 0 else 128
        if hw_128 <= cap_k:
            tk, ks = hw_128, 1
        else:
            ks = _cdiv(hw, cap_k)
            tk = _round_up(_cdiv(hw, ks), 128)               # tk <= cap_k, tk*ks >= hw
        return tc, int(tk), int(ks), resident

    plans = [plan(tc) for tc in tc_candidates]
    choice = plans[-1]                       # smallest tc -> largest tk
    for p in plans:                          # widest tc whose tk is not squeezed
        if p[1] >= min(hw_128, 4096):
            choice = p
            break
    tc, tk, ks, mask_resident = choice
    return tc, tk, ks, tk * ks, mask_resident


# ---------------------------------------------------------------------------
# Wrapper
# ---------------------------------------------------------------------------
def region_wise_avg_pooling(feature_map, mask):
    """Pallas implementation of RegionWiseAvgPooling.forward.

    feature_map: (B, C, H, W) float
    mask:        (B, R, Hm, Wm) float
    returns:     (B, R, C) float
    """
    b, c, h, w = feature_map.shape
    bm, r, _, _ = mask.shape
    assert b == bm, "batch mismatch"

    mask = _prepare_mask(feature_map, mask)

    dtype = feature_map.dtype
    itemsize = jnp.dtype(dtype).itemsize
    hw = h * w

    # Pad region count to match the I/O dtype's sublane packing
    # (8 rows for f32, 16 for bf16/f16).  Padded rows are all-zero.
    r_align = max(8, 32 // itemsize)
    r_pad = max(r_align, _round_up(r, r_align))

    capacity = _vmem_capacity_bytes()
    tc, tk, ks, hw_pad, mask_resident = _select_tiles(
        b, c, r_pad, hw, itemsize, capacity)

    feat_flat = feature_map.reshape(b, c, hw)
    mask_flat = mask.reshape(b, r, hw).astype(dtype)
    if hw_pad != hw:
        # Zero-padded columns contribute exact zeros to the sums.
        feat_flat = jnp.pad(feat_flat, ((0, 0), (0, 0), (0, hw_pad - hw)))
        mask_flat = jnp.pad(mask_flat, ((0, 0), (0, 0), (0, hw_pad - hw)))
    if r_pad != r:
        mask_flat = jnp.pad(mask_flat, ((0, 0), (0, r_pad - r), (0, 0)))

    if mask_resident:
        # Whole padded mask resident in VMEM, chunked along HW so the kernel
        # indexes chunk k on a leading axis: no per-(ci, k) mask re-DMA and no
        # lane-dim dynamic slicing.
        mask_in = mask_flat.reshape(b, r_pad, ks, tk).transpose(0, 2, 1, 3)
        mask_spec = pl.BlockSpec((pl.Squeezed(), ks, r_pad, tk),
                                 lambda bi, ci, k: (bi, 0, 0, 0))
        mask_hbm_reads = b * r_pad * hw_pad
        mask_vmem = 2 * ks * r_pad * tk * itemsize
    else:
        mask_in = mask_flat
        mask_spec = pl.BlockSpec((pl.Squeezed(), r_pad, tk),
                                 lambda bi, ci, k: (bi, 0, k))
        mask_hbm_reads = b * (c // tc) * r_pad * hw_pad   # re-read per C tile
        mask_vmem = 2 * r_pad * tk * itemsize

    cast_bf16 = dtype == jnp.float32

    kernel = functools.partial(
        _region_pool_kernel, inv_hw=1.0 / float(hw),
        mask_resident=mask_resident, cast_bf16=cast_bf16)

    # Actual VMEM footprint of this tiling (double-buffered blocks + scratch).
    footprint = (2 * tc * tk * itemsize          # feat blocks
                 + mask_vmem                     # mask block(s)
                 + 2 * r_pad * tc * itemsize     # out blocks
                 + tc * r_pad * 4)               # f32 accumulator scratch
    vmem_limit = int(max(footprint + (4 << 20),
                         16 << 20,
                         min(capacity - (2 << 20), 2 * footprint + (8 << 20))))

    cost = pl.CostEstimate(
        flops=2 * b * r_pad * c * hw_pad,
        transcendentals=0,
        bytes_accessed=(b * c * hw_pad + mask_hbm_reads + b * r_pad * c)
                       * itemsize,
    )

    out = pl.pallas_call(
        kernel,
        out_shape=jax.ShapeDtypeStruct((b, r_pad, c), dtype),
        grid=(b, c // tc, ks),
        in_specs=[
            mask_spec,
            pl.BlockSpec((pl.Squeezed(), tc, tk), lambda bi, ci, k: (bi, ci, k)),
        ],
        out_specs=pl.BlockSpec((pl.Squeezed(), r_pad, tc),
                               lambda bi, ci, k: (bi, 0, ci)),
        scratch_shapes=[pltpu.VMEM((tc, r_pad), jnp.float32)],
        compiler_params=pltpu.CompilerParams(
            dimension_semantics=("parallel", "parallel", "arbitrary"),
            vmem_limit_bytes=vmem_limit),
        cost_estimate=cost,
    )(mask_in, feat_flat)

    return out[:, :r, :]


# ---------------------------------------------------------------------------
# Reference + test
# ---------------------------------------------------------------------------
def _reference(feature_map, mask):
    """Pure-JAX reference mirroring the PyTorch module exactly."""
    mask = _prepare_mask(feature_map, mask)
    prod = mask[:, :, None, :, :] * feature_map[:, None, :, :, :]
    return prod.mean(axis=(-1, -2)).astype(feature_map.dtype)


if __name__ == "__main__":
    key = jax.random.PRNGKey(0)
    k1, k2, k3 = jax.random.split(key, 3)

    B, C, H, W, R = 2, 4, 16, 16, 3
    feature_map = jax.random.normal(k1, (B, C, H, W), dtype=jnp.float32)

    # Case 1: mask at the same resolution (no interpolation / threshold branch).
    mask_same = jax.random.uniform(k2, (B, R, H, W), dtype=jnp.float32)
    out_same = jax.block_until_ready(region_wise_avg_pooling(feature_map, mask_same))
    ref_same = _reference(feature_map, mask_same)

    # Case 2: mask at a smaller resolution -> bilinear (align_corners=True) + >=0.5.
    mask_small = jax.random.uniform(k3, (B, R, 8, 8), dtype=jnp.float32)
    out_small = jax.block_until_ready(region_wise_avg_pooling(feature_map, mask_small))
    ref_small = _reference(feature_map, mask_small)

    assert out_same.shape == (B, R, C)
    assert out_small.shape == (B, R, C)
    assert jnp.allclose(out_same, ref_same, atol=1e-3, rtol=1e-3)
    assert jnp.allclose(out_small, ref_small, atol=1e-3, rtol=1e-3)

    print("KERNEL_OK")
</pallas_src>

<mosaic_0001>
module attributes {stable_mosaic.version = 11 : i64} {
  func.func @_region_pool_kernel(%arg0: i32, %arg1: i32, %arg2: i32, %arg3: memref<1x1x8x256xf32, #tpu.memory_space<vmem>>, %arg4: memref<1x4x256xf32, #tpu.memory_space<vmem>>, %arg5: memref<1x8x4xf32, #tpu.memory_space<vmem>>, %arg6: memref<4x8xf32, #tpu.memory_space<vmem>>) attributes {dimension_semantics = [#tpu.dimension_semantics<parallel>, #tpu.dimension_semantics<parallel>, #tpu.dimension_semantics<arbitrary>], iteration_bounds = array<i64: 2, 1, 1>, scalar_prefetch = 0 : i64, scratch_operands = 1 : i64, tpu.core_type = #tpu.core_type<tc>, window_params = [{transform_indices = @transform_0, window_bounds = array<i64: 1, 1, 8, 256>}, {transform_indices = @transform_1, window_bounds = array<i64: 1, 4, 256>}, {transform_indices = @transform_2, window_bounds = array<i64: 1, 8, 4>}]} {
    %c0_i32 = arith.constant 0 : i32
    %0 = arith.cmpi eq, %arg2, %c0_i32 : i32
    %1 = arith.extui %0 : i1 to i32
    %c0_i32_0 = arith.constant 0 : i32
    %2 = arith.cmpi ne, %1, %c0_i32_0 : i32
    scf.if %2 {
      %cst_12 = arith.constant 0.000000e+00 : f32
      %17 = vector.broadcast %cst_12 : f32 to vector<4x8xf32>
      %c0_13 = arith.constant 0 : index
      %c0_14 = arith.constant 0 : index
      %18 = vector.load %arg6[%c0_13, %c0_14] : memref<4x8xf32, #tpu.memory_space<vmem>>, vector<4x8xf32>
      tpu.vector_store %arg6[%c0_13, %c0_14], %17 {strides = array<i32>} : memref<4x8xf32, #tpu.memory_space<vmem>>, vector<4x8xf32>,
    } else {
    }
    %c0 = arith.constant 0 : index
    %c0_1 = arith.constant 0 : index
    %c0_2 = arith.constant 0 : index
    %3 = vector.load %arg4[%c0, %c0_1, %c0_2] : memref<1x4x256xf32, #tpu.memory_space<vmem>>, vector<1x4x256xf32>
    %4 = vector.shape_cast %3 : vector<1x4x256xf32> to vector<4x256xf32>
    %c0_3 = arith.constant 0 : index
    %5 = arith.index_cast %arg2 : i32 to index
    %c0_4 = arith.constant 0 : index
    %c0_5 = arith.constant 0 : index
    %6 = vector.load %arg3[%c0_3, %5, %c0_4, %c0_5] : memref<1x1x8x256xf32, #tpu.memory_space<vmem>>, vector<1x1x8x256xf32>
    %7 = vector.shape_cast %6 : vector<1x1x8x256xf32> to vector<8x256xf32>
    %8 = arith.truncf %4 : vector<4x256xf32> to vector<4x256xbf16>
    %9 = arith.truncf %7 : vector<8x256xf32> to vector<8x256xbf16>
    %c0_6 = arith.constant 0 : index
    %c0_7 = arith.constant 0 : index
    %10 = vector.load %arg6[%c0_6, %c0_7] : memref<4x8xf32, #tpu.memory_space<vmem>>, vector<4x8xf32>
    %cst = arith.constant dense<0.000000e+00> : vector<4x8xf32>
    %11 = tpu.matmul %8, %9, %cst {dimension_numbers = #tpu.dot_dimension_numbers<[1], [1], [0], [0], [0, 0, 1, 0], [], []>} : vector<4x256xbf16>, vector<8x256xbf16>, vector<4x8xf32> -> vector<4x8xf32>
    %12 = arith.addf %10, %11 : vector<4x8xf32>
    %c0_8 = arith.constant 0 : index
    %c0_9 = arith.constant 0 : index
    %13 = vector.load %arg6[%c0_8, %c0_9] : memref<4x8xf32, #tpu.memory_space<vmem>>, vector<4x8xf32>
    tpu.vector_store %arg6[%c0_8, %c0_9], %12 {strides = array<i32>} : memref<4x8xf32, #tpu.memory_space<vmem>>, vector<4x8xf32>,
    %c0_i32_10 = arith.constant 0 : i32
    %14 = arith.cmpi eq, %arg2, %c0_i32_10 : i32
    %15 = arith.extui %14 : i1 to i32
    %c0_i32_11 = arith.constant 0 : i32
    %16 = arith.cmpi ne, %15, %c0_i32_11 : i32
    scf.if %16 {
      %c0_12 = arith.constant 0 : index
      %c0_13 = arith.constant 0 : index
      %17 = vector.load %arg6[%c0_12, %c0_13] : memref<4x8xf32, #tpu.memory_space<vmem>>, vector<4x8xf32>
      %cst_14 = arith.constant 3.906250e-03 : f32
      %18 = vector.broadcast %cst_14 : f32 to vector<4x8xf32>
      %19 = arith.mulf %17, %18 : vector<4x8xf32>
      %20 = tpu.transpose %19, [1, 0] : vector<4x8xf32> -> vector<8x4xf32>
      %c0_15 = arith.constant 0 : index
      %c0_16 = arith.constant 0 : index
      %c0_17 = arith.constant 0 : index
      %21 = vector.load %arg5[%c0_15, %c0_16, %c0_17] : memref<1x8x4xf32, #tpu.memory_space<vmem>>, vector<1x8x4xf32>
      %22 = vector.shape_cast %21 : vector<1x8x4xf32> to vector<8x4xf32>
      %23 = vector.shape_cast %20 : vector<8x4xf32> to vector<1x8x4xf32>
      tpu.vector_store %arg5[%c0_15, %c0_16, %c0_17], %23 {strides = array<i32>} : memref<1x8x4xf32, #tpu.memory_space<vmem>>, vector<1x8x4xf32>,
    } else {
    }
    return
  }
  func.func @transform_0(%arg0: i32, %arg1: i32, %arg2: i32) -> (i32, i32, i32, i32) {
    %c0_i32 = arith.constant 0 : i32
    %c0_i32_0 = arith.constant 0 : i32
    %c0_i32_1 = arith.constant 0 : i32
    %c0_i32_2 = arith.constant 0 : i32
    return %arg0, %c0_i32, %c0_i32_0, %c0_i32_1 : i32, i32, i32, i32
  }
  func.func @transform_1(%arg0: i32, %arg1: i32, %arg2: i32) -> (i32, i32, i32) {
    %c0_i32 = arith.constant 0 : i32
    return %arg0, %arg1, %arg2 : i32, i32, i32
  }
  func.func @transform_2(%arg0: i32, %arg1: i32, %arg2: i32) -> (i32, i32, i32) {
    %c0_i32 = arith.constant 0 : i32
    %c0_i32_0 = arith.constant 0 : i32
    return %arg0, %c0_i32, %arg1 : i32, i32, i32
  }
}

</mosaic_0001>

<llo_original>
// kernel: tpu_custom_call.1
$region0: #{tpu_custom_call.1}
  #allocation0 [shape = 'u32[]', space=smem, size = 0x4, offset = 0x4, fixed_abs, tag = 'smem constant byte address 0x4 - core index']
  #allocation1 [shape = 'u32[72,128]{1,0:T(1,128)}', space=vmem, size = 0x9000, scoped, tag = 'internal scratch']
  #allocation2 [shape = 'f32[4,8]{1,0:T(4,128)}', space=vmem, size = 0x800, scoped, tag = 'scratch operand']
  %s0 = inlined_call_operand.hbm [shape: f32[2,1,8,256], index: 0, kind: input, shape index: {}]
  %s1 = inlined_call_operand.hbm [shape: f32[2,4,256], index: 1, kind: input, shape index: {}]
  %s2 = inlined_call_operand.vmem [shape: f32[2,8,4], index: 2, kind: output, shape index: {}]
  %s3 = sld [smem:[#allocation0]]
  $region57: #{tpu_custom_call.1} parent=0
    _
  %s5 = ssub.s32 1, %s3
  %s6 = scalar_select 0, %s5, %s3
  $region1: #{tpu_custom_call.1} parent=0
    #allocation3 [shape = 'u8[16384]{0}', space=vmem, size = 0x4000, scoped, tag = 'input window, operand 0']
    #allocation4 [shape = 's32[2]{0}', space=sflag, size = 0x8, scoped, tag = 'scoped memory for tpu_custom_call.1']
    #allocation5 [shape = 'u8[8192]{0}', space=vmem, size = 0x2000, scoped, tag = 'input window, operand 1']
    #allocation6 [shape = 's32[2]{0}', space=sflag, size = 0x8, scoped, tag = 'scoped memory for tpu_custom_call.1']
    %7 = vsyncpa [#allocation4], 0
    %s8 = scalar_lea.sflag [#allocation4], 1
    %9 = vsyncpa %s8, 0
    %10 = vsyncpa [#allocation6], 0
    %s11 = scalar_lea.sflag [#allocation6], 1
    %12 = vsyncpa %s11, 0
    loop: start=0, step=1, limit=4
    $region2: #{tpu_custom_call.1} parent=1 // loop_pre_header
      _
    $region3: #{tpu_custom_call.1} parent=1 // loop_header
      %s14 = sphi 0, %s18
      %p15 = scmp.ge.s32.totalorder %s14, 4
      %s21 = sphi 0, %s40
      %s22 = sphi 0, %s36
      %s23 = sphi 0, %s32
      %s24 = sphi 0, %s21
      %s25 = sphi 0, %s22
      %s26 = sphi 0, %s23
      %s27 = sphi 0, %s24
      %s28 = sphi 0, %s25
      %s29 = sphi 0, %s26
      %s43 = sphi 0, %s45
      %s46 = sphi 0, %s43
      %s47 = sphi 0, %s46
      %s63 = sphi 0, %s47
      %s73 = sphi 0, %s75
      %s76 = sphi 0, %s73
      %s77 = sphi 0, %s76
      %s93 = sphi 0, %s77
      %s101 = sphi 0, %s103
      %s104 = sphi 0, %s101
      %s105 = sphi 0, %s104
      %s121 = sphi 0, %s105
    $region4: #{tpu_custom_call.1} parent=1 // loop_header_branch
      %17 = sbr.rel (%p15) target = $region8
    $region5: #{tpu_custom_call.1} parent=1 // loop_body
      %s19 = ssub.s32 %s14, 1
      %s20 = ssub.s32 %s14, 2
      %s30 = sadd.s32 1, %s23
      %p31 = scmp.ge.s32.totalorder %s30, 1
      %s32 = scalar_select %p31, 0, %s30
      %s33 = sadd.s32 1, %s22
      %s34 = scalar_select %p31, %s33, %s22
      %p35 = scmp.ge.s32.totalorder %s34, 1
      %s36 = scalar_select %p35, 0, %s34
      %s37 = sadd.s32 1, %s21
      %s38 = scalar_select %p35, %s37, %s21
      %p39 = scmp.ge.s32.totalorder %s38, 2
      %s40 = scalar_select %p39, 0, %s38
      %s41 = ssub.s32 %s21, %s40
      %p42 = scmp.eq.s32.totalorder %s41, 0
      %s44 = sadd.s32 %s43, 1
      %s45 = scalar_select %p42, %s43, %s44
      %p48 = pneg %p42
      %p49 = scmp.eq.s32.totalorder %s14, 1
      %p50 = por %p48, %p49
      %p51 = scmp.ne.s32.totalorder %s43, %s46
      %p52 = scmp.eq.s32.totalorder %s14, 0
      %p53 = por %p51, %p52
      %p54 = scmp.ne.s32.totalorder %s43, %s46
      %p55 = scmp.eq.s32.totalorder %s19, 1
      %p56 = por %p54, %p55
      %p57 = scmp.ne.s32.totalorder %s46, %s47
      %p58 = scmp.eq.s32.totalorder %s19, 0
      %p59 = por %p57, %p58
      %p60 = scmp.ne.s32.totalorder %s46, %s47
      %p61 = scmp.eq.s32.totalorder %s20, 1
      %p62 = por %p60, %p61
      %p64 = scmp.ne.s32.totalorder %s47, %s63
      %p65 = scmp.eq.s32.totalorder %s20, 0
      %p66 = por %p64, %p65
      %s67 = ssub.s32 %s21, %s40
      %s68 = ssub.s32 %s22, %s36
      %s69 = sor.u32 %s67, %s68
      %s70 = ssub.s32 %s23, %s32
      %s71 = sor.u32 %s69, %s70
      %p72 = scmp.eq.s32.totalorder %s71, 0
      %s74 = sadd.s32 %s73, 1
      %s75 = scalar_select %p72, %s73, %s74
      %p78 = pneg %p72
      %p79 = scmp.eq.s32.totalorder %s14, 1
      %p80 = por %p78, %p79
      %p81 = scmp.ne.s32.totalorder %s73, %s76
      %p82 = scmp.eq.s32.totalorder %s14, 0
      %p83 = por %p81, %p82
      %p84 = scmp.ne.s32.totalorder %s73, %s76
      %p85 = scmp.eq.s32.totalorder %s19, 1
      %p86 = por %p84, %p85
      %p87 = scmp.ne.s32.totalorder %s76, %s77
      %p88 = scmp.eq.s32.totalorder %s19, 0
      %p89 = por %p87, %p88
      %p90 = scmp.ne.s32.totalorder %s76, %s77
      %p91 = scmp.eq.s32.totalorder %s20, 1
      %p92 = por %p90, %p91
      %p94 = scmp.ne.s32.totalorder %s77, %s93
      %p95 = scmp.eq.s32.totalorder %s20, 0
      %p96 = por %p94, %p95
      %s97 = ssub.s32 %s21, %s40
      %s98 = ssub.s32 %s22, %s36
      %s99 = sor.u32 %s97, %s98
      %p100 = scmp.eq.s32.totalorder %s99, 0
      %s102 = sadd.s32 %s101, 1
      %s103 = scalar_select %p100, %s101, %s102
      %p106 = pneg %p100
      %p107 = scmp.eq.s32.totalorder %s14, 1
      %p108 = por %p106, %p107
      %p109 = scmp.ne.s32.totalorder %s101, %s104
      %p110 = scmp.eq.s32.totalorder %s14, 0
      %p111 = por %p109, %p110
      %p112 = scmp.ne.s32.totalorder %s101, %s104
      %p113 = scmp.eq.s32.totalorder %s19, 1
      %p114 = por %p112, %p113
      %p115 = scmp.ne.s32.totalorder %s104, %s105
      %p116 = scmp.eq.s32.totalorder %s19, 0
      %p117 = por %p115, %p116
      %p118 = scmp.ne.s32.totalorder %s104, %s105
      %p119 = scmp.eq.s32.totalorder %s20, 1
      %p120 = por %p118, %p119
      %p122 = scmp.ne.s32.totalorder %s105, %s121
      %p123 = scmp.eq.s32.totalorder %s20, 0
      %p124 = por %p122, %p123
      %p125 = scmp.le.s32.totalorder 1, %s14
      %p126 = scmp.lt.s32.totalorder %s14, 3
      %p127 = pnand %p125, %p126
      %p128 = pneg %p127
      // Predicated region
      $region9: #{tpu_custom_call.1} parent=5 // pred_check
        _
      $region10: #{tpu_custom_call.1} parent=5 // pred_check_branch
        %130 = sbr.rel (%p127) target = $region12
      $region11: #{tpu_custom_call.1} parent=5 // pred_region
        %s131 = ssub.s32 %s14, 1
      $region12: #{tpu_custom_call.1} parent=5 // pred_fallthru
        _
      %p132 = scmp.lt.s32.totalorder %s14, 2
      // Predicated region
      $region13: #{tpu_custom_call.1} parent=5 // pred_check
        %p133 = pneg %p132
      $region14: #{tpu_custom_call.1} parent=5 // pred_check_branch
        %135 = sbr.rel (%p133) target = $region16
      $region15: #{tpu_custom_call.1} parent=5 // pred_region
        // Predicated region
        $region17: #{tpu_custom_call.1} parent=15 // pred_check
          %p136 = pneg %p53
        $region18: #{tpu_custom_call.1} parent=15 // pred_check_branch
          %138 = sbr.rel (%p136) target = $region20
        $region19: #{tpu_custom_call.1} parent=15 // pred_region
          %s139 = sand.u32 %s43, 1
          %s140 = scalar_lea.sflag [#allocation4], %s139
          %s141 = sand.u32 %s43, 1
          %s142 = smul.addr %s141, 16
          %s143 = scalar_lea.vmem [#allocation3], %s142
          %145 = vsyncadd %s140, 0
          %s146 = smul.addr %s21, 2
          %s147 = smul.addr %s146, 8
          %s148 = scalar_lea.hbm %s0, %s147
          %s150 = sshll.u32 %s148, 4
          %s151 = int_to_ptr.hbm [resolvable:$true] %s150
          %s152 = sshll.u32 %s143, 4
          %s153 = int_to_ptr.vmem [resolvable:$true] %s152
          %155 = dma.hbm_to_vmem [thread:$0]  %s151, 256, %s153, %s140
        $region20: #{tpu_custom_call.1} parent=15 // pred_fallthru
          _
        // Predicated region
        $region21: #{tpu_custom_call.1} parent=15 // pred_check
          %p156 = pneg %p83
        $region22: #{tpu_custom_call.1} parent=15 // pred_check_branch
          %158 = sbr.rel (%p156) target = $region24
        $region23: #{tpu_custom_call.1} parent=15 // pred_region
          %s159 = sand.u32 %s73, 1
          %s160 = scalar_lea.sflag [#allocation6], %s159
          %s161 = sand.u32 %s73, 1
          %s162 = smul.addr %s161, 8
          %s163 = scalar_lea.vmem [#allocation5], %s162
          %s164 = smul.u32 2, %s23
          %166 = vsyncadd %s160, 0
          %s167 = smul.addr %s22, 2
          %s168 = sadd.s32 %s164, %s167
          %s169 = smul.addr %s21, 2
          %s170 = sadd.s32 %s168, %s169
          %s171 = smul.addr %s170, 4
          %s172 = scalar_lea.hbm %s1, %s171
          %s174 = sshll.u32 %s172, 4
          %s175 = int_to_ptr.hbm [resolvable:$true] %s174
          %s176 = sshll.u32 %s163, 4
          %s177 = int_to_ptr.vmem [resolvable:$true] %s176
          %179 = dma.hbm_to_vmem [thread:$0]  %s175, 128, %s177, %s160
        $region24: #{tpu_custom_call.1} parent=15 // pred_fallthru
          _
      $region16: #{tpu_custom_call.1} parent=5 // pred_fallthru
        _
      %p180 = scmp.le.s32.totalorder 1, %s14
      %p181 = scmp.lt.s32.totalorder %s14, 3
      %p182 = pnand %p180, %p181
      %p183 = pneg %p182
      // Predicated region
      $region25: #{tpu_custom_call.1} parent=5 // pred_check
        _
      $region26: #{tpu_custom_call.1} parent=5 // pred_check_branch
        %185 = sbr.rel (%p182) target = $region28
      $region27: #{tpu_custom_call.1} parent=5 // pred_region
        %s186 = ssub.s32 %s14, 1
        %s187 = sand.u32 %s46, 1
        %s188 = scalar_lea.sflag [#allocation4], %s187
        %s189 = sand.u32 %s46, 1
        %s190 = smul.addr %s189, 16
        %s191 = scalar_lea.vmem [#allocation3], %s190
        // Predicated region
        $region29: #{tpu_custom_call.1} parent=27 // pred_check
          %p192 = pneg %p59
        $region30: #{tpu_custom_call.1} parent=27 // pred_check_branch
          %194 = sbr.rel (%p192) target = $region32
        $region31: #{tpu_custom_call.1} parent=27 // pred_region
          %196 = dma.done %s188, 256
        $region32: #{tpu_custom_call.1} parent=27 // pred_fallthru
          _
        %s197 = sand.u32 %s76, 1
        %s198 = scalar_lea.sflag [#allocation6], %s197
        %s199 = sand.u32 %s76, 1
        %s200 = smul.addr %s199, 8
        %s201 = scalar_lea.vmem [#allocation5], %s200
        // Predicated region
        $region33: #{tpu_custom_call.1} parent=27 // pred_check
          %p202 = pneg %p89
        $region34: #{tpu_custom_call.1} parent=27 // pred_check_branch
          %204 = sbr.rel (%p202) target = $region36
        $region35: #{tpu_custom_call.1} parent=27 // pred_region
          %206 = dma.done %s198, 128
        $region36: #{tpu_custom_call.1} parent=27 // pred_fallthru
          _
        %s207 = sand.u32 %s46, 1
        %s208 = scalar_lea.sflag [#allocation4], %s207
        %s209 = sand.u32 %s46, 1
        %s210 = smul.addr %s209, 16
        %s211 = scalar_lea.vmem [#allocation3], %s210
        %p212 = pneg %p59
        %p213 = pneg %p56
        %s214 = sand.u32 %s76, 1
        %s215 = scalar_lea.sflag [#allocation6], %s214
        %s216 = sand.u32 %s76, 1
        %s217 = smul.addr %s216, 8
        %s218 = scalar_lea.vmem [#allocation5], %s217
        %p219 = pneg %p89
        %p220 = pneg %p86
        %p221 = pneg %p117
        %p222 = pneg %p114
        %p223 = scmp.lt.s32.totalorder %s24, 1
        %s224 = scalar_select %p223, %s24, 1
        %p225 = scmp.lt.s32.totalorder %s25, 0
        %s226 = scalar_select %p225, %s25, 0
        %s227 = sadd.s32 %s226, %s224
        %s228 = smul.addr %s227, 8
        %s229 = scalar_lea.vmem %s2, %s228
        %s230 = smul.u32 2, %s26
        %p231 = scmp.lt.s32.totalorder %s24, 1
        %s232 = scalar_select %p231, %s24, 1
        %p233 = scmp.lt.s32.totalorder %s25, 0
        %s234 = scalar_select %p233, %s25, 0
        %s235 = sadd.s32 %s234, %s232
        %s236 = smul.addr %s235, 8
        %s237 = scalar_lea.vmem %s2, %s236
        %p239 = scmp.eq.s32.totalorder %s26, 0
        // Predicated region
        $region37: #{tpu_custom_call.1} parent=27 // pred_check
          %p240 = pneg %p239
        $region38: #{tpu_custom_call.1} parent=27 // pred_check_branch
          %242 = sbr.rel (%p240) target = $region40
        $region39: #{tpu_custom_call.1} parent=27 // pred_region
          %vm243 = vcmask 60416
          %244 = vst.msk [vmem:[#allocation2] sm:$0xf] %vm243, 0.0
        $region40: #{tpu_custom_call.1} parent=27 // pred_fallthru
          _
        %v245 = vld [vmem:[%s201] sm:$0xff]
        %s246 = smul.u32 %s26, 2
        %s247 = smul.addr %s246, 8
        %s248 = scalar_lea.vmem %s191, %s247 [#allocation3]
        %v249 = vld [vmem:[%s248] sm:$0xff]
        %v250 = vld [vmem:[%s248 + $0x8] sm:$0xff]
        %252 = vst [vmem:[#allocation1] ss:$2 sm:$0xff] %v245
        %v253 = vld.sshfl [vmem:[#allocation1] sm:$0xff pattern:$0x75316420]
        %v254 = vld.sshfl [vmem:[#allocation1 + $0x8] sm:$0xff pattern:$0x75316420]
        %v257 = vpack.c.bf16 %v253, %v253
        %v258 = vpack.c.bf16 %v254, %v254
        %v259 = vpack.c.bf16 %v249, %v249
        %v260 = vpack.c.bf16 %v250, %v250
        %v261 = vld [vmem:[#allocation2] sm:$0xf]
        %262 = vmatpush.bf16.xpose.msra.mxu0 0
        %263 = vmatpush.bf16.xpose.msra.mxu0 0
        %264 = vmatpush.bf16.xpose.msra.mxu0 0
        %265 = vmatpush.bf16.xpose.msra.mxu0 0
        %266 = vmatpush.bf16.xpose.msra.mxu0 0
        %267 = vmatpush.bf16.xpose.msra.mxu0 0
        %268 = vmatpush.bf16.xpose.msra.mxu0 0
        %269 = vmatpush.bf16.xpose.msra.mxu0 %v259
        %270 = vmatmul.bf16.gmra.mxu0 %v257
        %v271 = vpop.f32.mrf.mxu0
        %v272 = vadd.f32 0.0, %v271
        %v273 = vpop.f32.mrf.mxu0
        %274 = vdwg.mxu0
        %275 = vmatpush.bf16.xpose.msra.mxu0 0
        %276 = vmatpush.bf16.xpose.msra.mxu0 0
        %277 = vmatpush.bf16.xpose.msra.mxu0 0
        %278 = vmatpush.bf16.xpose.msra.mxu0 0
        %279 = vmatpush.bf16.xpose.msra.mxu0 0
        %280 = vmatpush.bf16.xpose.msra.mxu0 0
        %281 = vmatpush.bf16.xpose.msra.mxu0 0
        %282 = vmatpush.bf16.xpose.msra.mxu0 %v260
        %283 = vmatmul.bf16.gmra.mxu0 %v258
        %v284 = vpop.f32.mrf.mxu0
        %v285 = vadd.f32 %v272, %v284
        %v286 = vpop.f32.mrf.mxu0
        %287 = vdwg.mxu0
        %v288 = vadd.f32 %v261, %v285
        %vm289 = vcmask 60416
        %290 = vst.msk [vmem:[#allocation2] sm:$0xf] %vm289, %v288
        // Predicated region
        $region41: #{tpu_custom_call.1} parent=27 // pred_check
          %p291 = pneg %p239
        $region42: #{tpu_custom_call.1} parent=27 // pred_check_branch
          %293 = sbr.rel (%p291) target = $region44
        $region43: #{tpu_custom_call.1} parent=27 // pred_region
          %v294 = vld [vmem:[#allocation2] sm:$0xf]
          %v295 = vmul.f32 %v294, 0.00390625
          %296 = vxpose.xlu0.b32.start [1/16] %v295, 128
          %297 = vxpose.xlu0.b32.cont [2/16] 0.0, 128
          %298 = vxpose.xlu0.b32.cont [3/16] 0.0, 128
          %299 = vxpose.xlu0.b32.cont [4/16] 0.0, 128
          %300 = vxpose.xlu0.b32.cont [5/16] 0.0, 128
          %301 = vxpose.xlu0.b32.cont [6/16] 0.0, 128
          %302 = vxpose.xlu0.b32.cont [7/16] 0.0, 128
          %303 = vxpose.xlu0.b32.cont [8/16] 0.0, 128
          %304 = vxpose.xlu0.b32.cont [9/16] 0.0, 128
          %305 = vxpose.xlu0.b32.cont [10/16] 0.0, 128
          %306 = vxpose.xlu0.b32.cont [11/16] 0.0, 128
          %307 = vxpose.xlu0.b32.cont [12/16] 0.0, 128
          %308 = vxpose.xlu0.b32.cont [13/16] 0.0, 128
          %309 = vxpose.xlu0.b32.cont [14/16] 0.0, 128
          %310 = vxpose.xlu0.b32.cont [15/16] 0.0, 128
          %311 = vxpose.xlu0.b32.end [16/16] 0.0, 128
          %v312 = vpop.trf.xlu0
          %v313 = vpop.trf.xlu0
          %v314 = vpop.trf.xlu0
          %v315 = vpop.trf.xlu0
          %v316 = vpop.trf.xlu0
          %v317 = vpop.trf.xlu0
          %v318 = vpop.trf.xlu0
          %v319 = vpop.trf.xlu0
          %v320 = vpop.trf.xlu0
          %v321 = vpop.trf.xlu0
          %v322 = vpop.trf.xlu0
          %v323 = vpop.trf.xlu0
          %v324 = vpop.trf.xlu0
          %v325 = vpop.trf.xlu0
          %v326 = vpop.trf.xlu0
          %v327 = vpop.trf.xlu0
          %vm328 = vcmask 31744
          %329 = vst.msk [vmem:[%s237] sm:$0xff] %vm328, %v312
        $region44: #{tpu_custom_call.1} parent=27 // pred_fallthru
          _
        %p330 = scmp.lt.s32.totalorder %s24, 1
        %s331 = scalar_select %p330, %s24, 1
        %p332 = scmp.lt.s32.totalorder %s25, 0
        %s333 = scalar_select %p332, %s25, 0
        %s334 = sadd.s32 %s333, %s331
        %s335 = smul.addr %s334, 8
        %s336 = scalar_lea.vmem %s2, %s335
        // Predicated region
        $region45: #{tpu_custom_call.1} parent=27 // pred_check
          %p337 = pneg %p114
        $region46: #{tpu_custom_call.1} parent=27 // pred_check_branch
          %339 = sbr.rel (%p337) target = $region48
        $region47: #{tpu_custom_call.1} parent=27 // pred_region
          _
        $region48: #{tpu_custom_call.1} parent=27 // pred_fallthru
          _
      $region28: #{tpu_custom_call.1} parent=5 // pred_fallthru
        _
      %p340 = scmp.le.s32.totalorder 2, %s14
      // Predicated region
      $region49: #{tpu_custom_call.1} parent=5 // pred_check
        %p341 = pneg %p340
      $region50: #{tpu_custom_call.1} parent=5 // pred_check_branch
        %343 = sbr.rel (%p341) target = $region52
      $region51: #{tpu_custom_call.1} parent=5 // pred_region
        %s344 = ssub.s32 %s14, 2
        // Predicated region
        $region53: #{tpu_custom_call.1} parent=51 // pred_check
          %p345 = pneg %p120
        $region54: #{tpu_custom_call.1} parent=51 // pred_check_branch
          %347 = sbr.rel (%p345) target = $region56
        $region55: #{tpu_custom_call.1} parent=51 // pred_region
          %p348 = scmp.lt.s32.totalorder %s27, 1
          %s349 = scalar_select %p348, %s27, 1
          %p350 = scmp.lt.s32.totalorder %s28, 0
          %s351 = scalar_select %p350, %s28, 0
          %s352 = sadd.s32 %s351, %s349
          %s353 = smul.addr %s352, 8
          %s354 = scalar_lea.vmem %s2, %s353
        $region56: #{tpu_custom_call.1} parent=51 // pred_fallthru
          _
      $region52: #{tpu_custom_call.1} parent=5 // pred_fallthru
        _
    $region6: #{tpu_custom_call.1} parent=1 // loop_footer
      %s18 = sadd.s32 1, %s14
    $region7: #{tpu_custom_call.1} parent=1 // loop_footer_branch
      %13 = sbr.rel target = $region3
    $region8: #{tpu_custom_call.1} parent=1 // loop_exit
      _
    %355 = vsyncpa [#allocation4], 1
    %s356 = scalar_lea.sflag [#allocation4], 1
    %357 = vsyncpa %s356, 1
    %358 = vsyncpa [#allocation6], 1
    %s359 = scalar_lea.sflag [#allocation6], 1
    %360 = vsyncpa %s359, 1

</llo_original>
